<compile_context>
chip_gen: v7x
topology: tpu7x:2x2x1
jax: 0.10.0
libtpu: 0.0.40
codegen_flags: <defaults>
</compile_context>

<pallas_src>
import functools

import jax
import jax.numpy as jnp
from jax.experimental import pallas as pl
from jax.experimental.pallas import tpu as pltpu


HIDDEN = 32        # hidden_size
IN_DIM = 3         # state dim
OUT_DIM = 1        # policy output dim
LANE = 128         # TPU lane width

# Packed-parameter slab layout: one (HIDDEN, 128) f32 block, lane-aligned.
PARAM_COLS = 128
W2_COL = 0                      # cols [0, 32)   : w2 (H, H), MXU operand lane-0 aligned
W1_COL = HIDDEN                 # cols [32, 35)  : w1 (H, 3)
B1_COL = HIDDEN + IN_DIM        # col  35        : b1 (H,)
B2_COL = HIDDEN + IN_DIM + 1    # col  36        : b2 (H,)
W3_COL = HIDDEN + IN_DIM + 2    # col  37        : w3 (H,)  (stored as a column)
B3_COL = HIDDEN + IN_DIM + 3    # col  38, row 0 : b3 scalar


def _round_up(x, m):
    return ((x + m - 1) // m) * m


def _actor_kernel(x_ref, p_ref, o_ref, *, use_bf16):
    """One batch tile of the 3-layer tanh MLP; batch lives on the lane axis."""
    x = x_ref[...]                                   # (IN_DIM, TB) = (3, TB)

    # Static slices of the resident parameter slab (no per-step DMA).
    w2 = p_ref[:, W2_COL:W2_COL + HIDDEN]            # (H, H)
    w1 = p_ref[:, W1_COL:W1_COL + IN_DIM]            # (H, 3)
    b1 = p_ref[:, B1_COL:B1_COL + 1]                 # (H, 1)
    b2 = p_ref[:, B2_COL:B2_COL + 1]                 # (H, 1)
    w3 = p_ref[:, W3_COL:W3_COL + 1]                 # (H, 1)
    b3 = p_ref[0:1, B3_COL:B3_COL + 1]               # (1, 1)

    # Layer 1: K=3 -> three VPU broadcast-FMAs instead of a wasted MXU pass.
    h1 = w1[:, 0:1] * x[0:1, :]
    h1 = h1 + w1[:, 1:2] * x[1:2, :]
    h1 = h1 + w1[:, 2:3] * x[2:3, :]
    h1 = jnp.tanh(h1 + b1)                           # (H, TB)

    # Layer 2: 32x32 matmul with N = TB (lane-dense) -> MXU, f32 accumulation.
    if use_bf16:
        h2_pre = jnp.dot(w2.astype(jnp.bfloat16), h1.astype(jnp.bfloat16),
                         preferred_element_type=jnp.float32)
    else:
        h2_pre = jnp.dot(w2, h1, preferred_element_type=jnp.float32)
    h2 = jnp.tanh(h2_pre + b2)                       # (H, TB)

    # Layer 3: N=1 -> elementwise scale + cross-sublane reduce (no MXU).
    out = jnp.sum(w3 * h2, axis=0, keepdims=True) + b3
    o_ref[...] = out.astype(o_ref.dtype)             # (1, TB), unmasked lane-dense vst


def _pick_tile(batch, block_b):
    """Lane-aligned tile; aims for >=2 grid steps so v7x's 2 TCs both get work."""
    bp128 = _round_up(batch, LANE)
    block_b = _round_up(max(block_b, LANE), LANE)
    if bp128 <= LANE:
        tb = LANE                                    # one 128-wide tile
    elif bp128 <= 2 * block_b:
        tb = _round_up(pl.cdiv(bp128, 2), LANE)      # exactly two tiles
    else:
        tb = block_b                                 # cap tile size, many steps
    return tb, _round_up(bp128, tb)


@functools.partial(jax.jit, static_argnames=("block_b", "use_bf16"))
def actor_forward_t(x_t, packed_params, *, block_b=4096, use_bf16=False):
    """Lane-dense entry point: x_t (3, B) float32 -> (1, B) float32.

    No wrapper-side transpose/reshape; use this from producers that can emit
    the state batch-on-lanes directly.
    """
    B = x_t.shape[1]
    tb, Bp = _pick_tile(B, block_b)
    if Bp != B:
        x_t = jnp.pad(x_t, ((0, 0), (0, Bp - B)))    # lane-axis zero pad only

    out_t = pl.pallas_call(
        functools.partial(_actor_kernel, use_bf16=use_bf16),
        out_shape=jax.ShapeDtypeStruct((OUT_DIM, Bp), jnp.float32),
        grid_spec=pltpu.PrefetchScalarGridSpec(
            num_scalar_prefetch=0,
            grid=(Bp // tb,),
            in_specs=[
                pl.BlockSpec((IN_DIM, tb), lambda i: (0, i)),         # state tile
                pl.BlockSpec((HIDDEN, PARAM_COLS), lambda i: (0, 0)),  # packed params
            ],
            out_specs=pl.BlockSpec((OUT_DIM, tb), lambda i: (0, i)),
        ),
        compiler_params=pltpu.CompilerParams(
            dimension_semantics=("parallel",),        # batch tiles are independent
        ),
    )(x_t, packed_params)

    if Bp != B:
        out_t = out_t[:, :B]
    return out_t


@functools.partial(jax.jit, static_argnames=("block_b", "use_bf16"))
def actor_forward(state, packed_params, *, block_b=4096, use_bf16=False):
    """PyTorch-compatible: state (B, 3) float32 -> (B, 1) float32."""
    out_t = actor_forward_t(state.T, packed_params,
                            block_b=block_b, use_bf16=use_bf16)
    return out_t.T


def init_actor_params(key, hidden_size=HIDDEN):
    """PyTorch nn.Linear-style init, natural (PyTorch) shapes."""
    ks = jax.random.split(key, 6)

    def uni(k, shape, fan_in):
        bound = 1.0 / (fan_in ** 0.5)
        return jax.random.uniform(k, shape, jnp.float32, -bound, bound)

    w1 = uni(ks[0], (hidden_size, IN_DIM), IN_DIM)       # Linear(3, H).weight
    b1 = uni(ks[1], (hidden_size,), IN_DIM)              # Linear(3, H).bias
    w2 = uni(ks[2], (hidden_size, hidden_size), hidden_size)
    b2 = uni(ks[3], (hidden_size,), hidden_size)
    w3 = uni(ks[4], (OUT_DIM, hidden_size), hidden_size)  # Linear(H, 1).weight
    b3 = uni(ks[5], (OUT_DIM,), hidden_size)
    # NOTE: Actor also owns policy_log_std (stochastic=True), a learnable scalar
    # that forward() never uses; it is intentionally omitted from the kernel.
    return w1, b1, w2, b2, w3, b3


def pack_actor_params(w1, b1, w2, b2, w3, b3):
    """Pack all parameters into one (H, 128) f32 slab (done once, offline)."""
    assert w1.shape == (HIDDEN, IN_DIM)
    p = jnp.zeros((HIDDEN, PARAM_COLS), jnp.float32)
    p = p.at[:, W2_COL:W2_COL + HIDDEN].set(w2)
    p = p.at[:, W1_COL:W1_COL + IN_DIM].set(w1)
    p = p.at[:, B1_COL].set(b1)
    p = p.at[:, B2_COL].set(b2)
    p = p.at[:, W3_COL].set(w3.reshape(HIDDEN))
    p = p.at[0, B3_COL].set(b3.reshape(()))
    return p


def actor_reference(state, w1, b1, w2, b2, w3, b3):
    h1 = jnp.tanh(state @ w1.T + b1)
    h2 = jnp.tanh(h1 @ w2.T + b2)
    return h2 @ w3.T + b3


if __name__ == "__main__":
    key = jax.random.PRNGKey(0)
    k_param, k_state1, k_state2 = jax.random.split(key, 3)

    params = init_actor_params(k_param, HIDDEN)
    packed = pack_actor_params(*params)

    # Small PyTorch-shaped batch (single 128-wide tile after padding).
    state = jax.random.normal(k_state1, (16, IN_DIM), dtype=jnp.float32)
    out = jax.block_until_ready(actor_forward(state, packed))
    ref = actor_reference(state, *params)
    assert out.shape == (16, OUT_DIM)
    assert jnp.allclose(out, ref, atol=1e-5, rtol=1e-5), "mismatch vs reference (B=16)"

    # Non-multiple batch exercising the 2-step grid + batch-padding path.
    state2 = jax.random.normal(k_state2, (300, IN_DIM), dtype=jnp.float32)
    out2 = jax.block_until_ready(actor_forward(state2, packed))
    ref2 = actor_reference(state2, *params)
    assert out2.shape == (300, OUT_DIM)
    assert jnp.allclose(out2, ref2, atol=1e-5, rtol=1e-5), "mismatch vs reference (B=300)"

    # Lane-dense entry point (no wrapper transpose) agrees as well.
    out_t = jax.block_until_ready(actor_forward_t(state.T, packed))
    assert jnp.allclose(out_t.T, ref, atol=1e-5, rtol=1e-5), "mismatch vs reference (_t)"

    print("KERNEL_OK")
</pallas_src>

<mosaic_0001>
module attributes {stable_mosaic.version = 11 : i64} {
  func.func @_actor_kernel(%arg0: i32, %arg1: memref<3x128xf32, #tpu.memory_space<vmem>>, %arg2: memref<32x128xf32, #tpu.memory_space<vmem>>, %arg3: memref<1x128xf32, #tpu.memory_space<vmem>>) attributes {dimension_semantics = [#tpu.dimension_semantics<parallel>], iteration_bounds = array<i64: 1>, scalar_prefetch = 0 : i64, scratch_operands = 0 : i64, tpu.core_type = #tpu.core_type<tc>, window_params = [{transform_indices = @transform_0, window_bounds = array<i64: 3, 128>}, {pipeline_mode = #tpu.pipeline_mode<synchronous>, transform_indices = @transform_1, window_bounds = array<i64: 32, 128>}, {transform_indices = @transform_2, window_bounds = array<i64: 1, 128>}]} {
    %c0 = arith.constant 0 : index
    %c0_0 = arith.constant 0 : index
    %0 = vector.load %arg1[%c0, %c0_0] : memref<3x128xf32, #tpu.memory_space<vmem>>, vector<3x128xf32>
    %c0_1 = arith.constant 0 : index
    %c0_2 = arith.constant 0 : index
    %1 = vector.load %arg2[%c0_1, %c0_2] : memref<32x128xf32, #tpu.memory_space<vmem>>, vector<32x32xf32>
    %c0_3 = arith.constant 0 : index
    %c32 = arith.constant 32 : index
    %2 = vector.load %arg2[%c0_3, %c32] : memref<32x128xf32, #tpu.memory_space<vmem>>, vector<32x3xf32>
    %c0_4 = arith.constant 0 : index
    %c35 = arith.constant 35 : index
    %3 = vector.load %arg2[%c0_4, %c35] : memref<32x128xf32, #tpu.memory_space<vmem>>, vector<32x1xf32>
    %c0_5 = arith.constant 0 : index
    %c36 = arith.constant 36 : index
    %4 = vector.load %arg2[%c0_5, %c36] : memref<32x128xf32, #tpu.memory_space<vmem>>, vector<32x1xf32>
    %c0_6 = arith.constant 0 : index
    %c37 = arith.constant 37 : index
    %5 = vector.load %arg2[%c0_6, %c37] : memref<32x128xf32, #tpu.memory_space<vmem>>, vector<32x1xf32>
    %c0_7 = arith.constant 0 : index
    %c38 = arith.constant 38 : index
    %6 = vector.load %arg2[%c0_7, %c38] : memref<32x128xf32, #tpu.memory_space<vmem>>, vector<1x1xf32>
    %7 = vector.extract_strided_slice %2 {offsets = [0, 0], sizes = [32, 1], strides = [1, 1]} : vector<32x3xf32> to vector<32x1xf32>
    %8 = vector.extract_strided_slice %0 {offsets = [0, 0], sizes = [1, 128], strides = [1, 1]} : vector<3x128xf32> to vector<1x128xf32>
    %9 = vector.broadcast %7 : vector<32x1xf32> to vector<32x128xf32>
    %10 = vector.broadcast %8 : vector<1x128xf32> to vector<32x128xf32>
    %11 = arith.mulf %9, %10 : vector<32x128xf32>
    %12 = vector.extract_strided_slice %2 {offsets = [0, 1], sizes = [32, 1], strides = [1, 1]} : vector<32x3xf32> to vector<32x1xf32>
    %13 = vector.extract_strided_slice %0 {offsets = [1, 0], sizes = [1, 128], strides = [1, 1]} : vector<3x128xf32> to vector<1x128xf32>
    %14 = vector.broadcast %12 : vector<32x1xf32> to vector<32x128xf32>
    %15 = vector.broadcast %13 : vector<1x128xf32> to vector<32x128xf32>
    %16 = arith.mulf %14, %15 : vector<32x128xf32>
    %17 = arith.addf %11, %16 : vector<32x128xf32>
    %18 = vector.extract_strided_slice %2 {offsets = [0, 2], sizes = [32, 1], strides = [1, 1]} : vector<32x3xf32> to vector<32x1xf32>
    %19 = vector.extract_strided_slice %0 {offsets = [2, 0], sizes = [1, 128], strides = [1, 1]} : vector<3x128xf32> to vector<1x128xf32>
    %20 = vector.broadcast %18 : vector<32x1xf32> to vector<32x128xf32>
    %21 = vector.broadcast %19 : vector<1x128xf32> to vector<32x128xf32>
    %22 = arith.mulf %20, %21 : vector<32x128xf32>
    %23 = arith.addf %17, %22 : vector<32x128xf32>
    %24 = vector.broadcast %3 : vector<32x1xf32> to vector<32x128xf32>
    %25 = arith.addf %23, %24 : vector<32x128xf32>
    %26 = math.tanh %25 : vector<32x128xf32>
    %cst = arith.constant dense<0.000000e+00> : vector<32x128xf32>
    %27 = tpu.matmul %1, %26, %cst {dimension_numbers = #tpu.dot_dimension_numbers<[1], [0], [0], [1], [0, 0, 1, 1], [], []>} : vector<32x32xf32>, vector<32x128xf32>, vector<32x128xf32> -> vector<32x128xf32>
    %28 = vector.broadcast %4 : vector<32x1xf32> to vector<32x128xf32>
    %29 = arith.addf %27, %28 : vector<32x128xf32>
    %30 = math.tanh %29 : vector<32x128xf32>
    %31 = vector.broadcast %5 : vector<32x1xf32> to vector<32x128xf32>
    %32 = arith.mulf %31, %30 : vector<32x128xf32>
    %cst_8 = arith.constant dense<0.000000e+00> : vector<128xf32>
    %33 = vector.multi_reduction <add>, %32, %cst_8 [0] : vector<32x128xf32> to vector<128xf32>
    %34 = vector.shape_cast %33 : vector<128xf32> to vector<1x128xf32>
    %35 = vector.broadcast %6 : vector<1x1xf32> to vector<1x128xf32>
    %36 = arith.addf %34, %35 : vector<1x128xf32>
    %c0_9 = arith.constant 0 : index
    %c0_10 = arith.constant 0 : index
    %37 = vector.load %arg3[%c0_9, %c0_10] : memref<1x128xf32, #tpu.memory_space<vmem>>, vector<1x128xf32>
    tpu.vector_store %arg3[%c0_9, %c0_10], %36 {strides = array<i32>} : memref<1x128xf32, #tpu.memory_space<vmem>>, vector<1x128xf32>,
    return
  }
  func.func @transform_0(%arg0: i32) -> (i32, i32) {
    %c0_i32 = arith.constant 0 : i32
    %c0_i32_0 = arith.constant 0 : i32
    return %c0_i32, %arg0 : i32, i32
  }
  func.func @transform_1(%arg0: i32) -> (i32, i32) {
    %c0_i32 = arith.constant 0 : i32
    %c0_i32_0 = arith.constant 0 : i32
    %c0_i32_1 = arith.constant 0 : i32
    return %c0_i32, %c0_i32_0 : i32, i32
  }
  func.func @transform_2(%arg0: i32) -> (i32, i32) {
    %c0_i32 = arith.constant 0 : i32
    %c0_i32_0 = arith.constant 0 : i32
    return %c0_i32, %arg0 : i32, i32
  }
}

</mosaic_0001>

<llo_original>
// kernel: actor_forward_t.1
$region0: #{actor_forward_t.1}
  #allocation0 [shape = 'u32[]', space=smem, size = 0x4, offset = 0x4, fixed_abs, tag = 'smem constant byte address 0x4 - core index']
  #allocation1 [shape = 'u32[144,128]{1,0:T(1,128)}', space=vmem, size = 0x12000, scoped, tag = 'internal scratch']
  %s0 = inlined_call_operand.vmem [shape: f32[3,128], index: 0, kind: input, shape index: {}]
  %s1 = inlined_call_operand.hbm [shape: f32[32,128], index: 1, kind: input, shape index: {}]
  %s2 = inlined_call_operand.hbm [shape: f32[1,128], index: 2, kind: output, shape index: {}]
  %s3 = sld [smem:[#allocation0]]
  $region22: #{actor_forward_t.1} parent=0
    _
  %s5 = ssub.s32 1, %s3
  %s6 = scalar_select 0, %s5, %s3
  $region1: #{actor_forward_t.1} parent=0
    #allocation2 [shape = 'u8[16384]{0}', space=vmem, size = 0x4000, scoped, tag = 'input window, operand 1, single buffered']
    #allocation3 [shape = 's32[1]{0}', space=sflag, size = 0x4, scoped, tag = 'scoped memory for actor_forward_t.1']
    #allocation4 [shape = 's32[1]{0}', space=sflag, size = 0x4, scoped, tag = 'scoped memory for actor_forward_t.1']
    #allocation5 [shape = 'u8[512]{0}', space=vmem, size = 0x400, scoped, tag = 'output window, operand 0, single buffered']
    %7 = vsyncpa [#allocation3], 0
    %8 = vsyncpa [#allocation4], 0
    // Predicated region
    $region2: #{actor_forward_t.1} parent=1 // pred_check
      _
    $region3: #{actor_forward_t.1} parent=1 // pred_check_branch
      %10 = sbr.rel (0) target = $region5
    $region4: #{actor_forward_t.1} parent=1 // pred_region
      _
    $region5: #{actor_forward_t.1} parent=1 // pred_fallthru
      _
    // Predicated region
    $region6: #{actor_forward_t.1} parent=1 // pred_check
      _
    $region7: #{actor_forward_t.1} parent=1 // pred_check_branch
      %12 = sbr.rel (0) target = $region9
    $region8: #{actor_forward_t.1} parent=1 // pred_region
      %s14 = ssub.s32 512, 512
      %15 = vsyncadd [#allocation3], %s14
      %s16 = sshll.u32 [#allocation2], 4
      %s17 = int_to_ptr.vmem [resolvable:$true] %s16
      %22 = dma.hbm_to_vmem [thread:$0]  %s1, 512, %s17, [#allocation3], 128, 128, 8
    $region9: #{actor_forward_t.1} parent=1 // pred_fallthru
      _
    // Predicated region
    $region10: #{actor_forward_t.1} parent=1 // pred_check
      _
    $region11: #{actor_forward_t.1} parent=1 // pred_check_branch
      %24 = sbr.rel (0) target = $region13
    $region12: #{actor_forward_t.1} parent=1 // pred_region
      %25 = dma.done [#allocation3], 512
    $region13: #{actor_forward_t.1} parent=1 // pred_fallthru
      _
    %v26 = vld [vmem:[%s0] sm:$0x7]
    %v27 = vld [vmem:[#allocation2] sm:$0xff]
    %v28 = vld [vmem:[#allocation2 + $0x8] sm:$0xff]
    %v29 = vld [vmem:[#allocation2 + $0x10] sm:$0xff]
    %v30 = vld [vmem:[#allocation2 + $0x18] sm:$0xff]
    %v31 = vld [vmem:[#allocation2] sm:$0x1]
    %33 = vset.pattern.permute.xlu0 32
    %34 = vperm.xlu0 %33, %v27
    %v35 = vpop.permute.xlu0 %34
    %38 = vset.pattern.permute.xlu0 32
    %39 = vperm.xlu0 %38, %v28
    %v40 = vpop.permute.xlu0 %39
    %43 = vset.pattern.permute.xlu0 32
    %44 = vperm.xlu0 %43, %v29
    %v45 = vpop.permute.xlu0 %44
    %48 = vset.pattern.permute.xlu0 32
    %49 = vperm.xlu0 %48, %v30
    %v50 = vpop.permute.xlu0 %49
    %v52 = vlaneseq
    %v53 = vshrl.u32 %v52, 7
    %v54 = vsub.s32 0, %v53
    %v55 = vrot.slane %v26, %v54
    %v56 = vmul.f32 %v35, %v55
    %v57 = vmul.f32 %v40, %v55
    %v58 = vmul.f32 %v45, %v55
    %v59 = vmul.f32 %v50, %v55
    %60 = vset.pattern.permute.xlu0 33
    %61 = vperm.xlu0 %60, %v27
    %v62 = vpop.permute.xlu0 %61
    %64 = vset.pattern.permute.xlu0 33
    %65 = vperm.xlu0 %64, %v28
    %v66 = vpop.permute.xlu0 %65
    %68 = vset.pattern.permute.xlu0 33
    %69 = vperm.xlu0 %68, %v29
    %v70 = vpop.permute.xlu0 %69
    %72 = vset.pattern.permute.xlu0 33
    %73 = vperm.xlu0 %72, %v30
    %v74 = vpop.permute.xlu0 %73
    %v76 = vlaneseq
    %v77 = vshrl.u32 %v76, 7
    %v78 = vsub.s32 1, %v77
    %v79 = vrot.slane %v26, %v78
    %v80 = vmul.f32 %v62, %v79
    %v81 = vmul.f32 %v66, %v79
    %v82 = vmul.f32 %v70, %v79
    %v83 = vmul.f32 %v74, %v79
    %v84 = vadd.f32 %v56, %v80
    %v85 = vadd.f32 %v57, %v81
    %v86 = vadd.f32 %v58, %v82
    %v87 = vadd.f32 %v59, %v83
    %88 = vset.pattern.permute.xlu0 34
    %89 = vperm.xlu0 %88, %v27
    %v90 = vpop.permute.xlu0 %89
    %92 = vset.pattern.permute.xlu0 34
    %93 = vperm.xlu0 %92, %v28
    %v94 = vpop.permute.xlu0 %93
    %96 = vset.pattern.permute.xlu0 34
    %97 = vperm.xlu0 %96, %v29
    %v98 = vpop.permute.xlu0 %97
    %100 = vset.pattern.permute.xlu0 34
    %101 = vperm.xlu0 %100, %v30
    %v102 = vpop.permute.xlu0 %101
    %v104 = vlaneseq
    %v105 = vshrl.u32 %v104, 7
    %v106 = vsub.s32 2, %v105
    %v107 = vrot.slane %v26, %v106
    %v108 = vmul.f32 %v90, %v107
    %v109 = vmul.f32 %v94, %v107
    %v110 = vmul.f32 %v98, %v107
    %v111 = vmul.f32 %v102, %v107
    %v112 = vadd.f32 %v84, %v108
    %v113 = vadd.f32 %v85, %v109
    %v114 = vadd.f32 %v86, %v110
    %v115 = vadd.f32 %v87, %v111
    %116 = vset.pattern.permute.xlu0 35
    %117 = vperm.xlu0 %116, %v27
    %v118 = vpop.permute.xlu0 %117
    %120 = vset.pattern.permute.xlu0 35
    %121 = vperm.xlu0 %120, %v28
    %v122 = vpop.permute.xlu0 %121
    %124 = vset.pattern.permute.xlu0 35
    %125 = vperm.xlu0 %124, %v29
    %v126 = vpop.permute.xlu0 %125
    %128 = vset.pattern.permute.xlu0 35
    %129 = vperm.xlu0 %128, %v30
    %v130 = vpop.permute.xlu0 %129
    %v132 = vadd.f32 %v112, %v118
    %v133 = vadd.f32 %v113, %v122
    %v134 = vadd.f32 %v114, %v126
    %v135 = vadd.f32 %v115, %v130
    %v136 = vtanh.pop %v132
    %v137 = vtanh.pop %v133
    %v138 = vtanh.pop %v134
    %v139 = vtanh.pop %v135
    %140 = vset.pattern.permute.xlu0 36
    %141 = vperm.xlu0 %140, %v27
    %v142 = vpop.permute.xlu0 %141
    %144 = vset.pattern.permute.xlu0 36
    %145 = vperm.xlu0 %144, %v28
    %v146 = vpop.permute.xlu0 %145
    %148 = vset.pattern.permute.xlu0 36
    %149 = vperm.xlu0 %148, %v29
    %v150 = vpop.permute.xlu0 %149
    %152 = vset.pattern.permute.xlu0 36
    %153 = vperm.xlu0 %152, %v30
    %v154 = vpop.permute.xlu0 %153
    %vm156 = vcmask 261120
    %v157 = vsel %vm156, %v27, 0
    %v159 = vsel %vm156, %v28, 0
    %v161 = vsel %vm156, %v29, 0
    %v163 = vsel %vm156, %v30, 0
    %165 = vmatprep.subr.mxu0 0.0
    %166 = vmatpush1.msra.mxu0 %v136
    %167 = vmatprep.subr.mxu0 0.0
    %168 = vmatpush1.msra.mxu0 %v137
    %169 = vmatprep.subr.mxu0 0.0
    %170 = vmatpush1.msra.mxu0 %v138
    %171 = vmatprep.subr.mxu0 0.0
    %172 = vmatpush1.msra.mxu0 %v139
    %173 = vmatprep.subr.mxu0 0.0
    %174 = vmatpush1.msra.mxu0 0.0
    %175 = vmatprep.subr.mxu0 0.0
    %176 = vmatpush1.msra.mxu0 0.0
    %177 = vmatprep.subr.mxu0 0.0
    %178 = vmatpush1.msra.mxu0 0.0
    %179 = vmatprep.subr.mxu0 0.0
    %180 = vmatpush1.msra.mxu0 0.0
    %181 = vmatprep.subr.mxu0 0.0
    %182 = vmatpush1.msra.mxu0 0.0
    %183 = vmatprep.subr.mxu0 0.0
    %184 = vmatpush1.msra.mxu0 0.0
    %185 = vmatprep.subr.mxu0 0.0
    %186 = vmatpush1.msra.mxu0 0.0
    %187 = vmatprep.subr.mxu0 0.0
    %188 = vmatpush1.msra.mxu0 0.0
    %189 = vmatprep.subr.mxu0 0.0
    %190 = vmatpush1.msra.mxu0 0.0
    %191 = vmatprep.subr.mxu0 0.0
    %192 = vmatpush1.msra.mxu0 0.0
    %193 = vmatprep.subr.mxu0 0.0
    %194 = vmatpush1.msra.mxu0 0.0
    %195 = vmatprep.subr.mxu0 0.0
    %196 = vmatpush1.msra.mxu0 0.0
    %197 = vmatprep.subr.mxu0 0.0
    %198 = vmatpush1.msra.mxu0 0.0
    %199 = vmatprep.subr.mxu0 0.0
    %200 = vmatpush1.msra.mxu0 0.0
    %201 = vmatprep.subr.mxu0 0.0
    %202 = vmatpush1.msra.mxu0 0.0
    %203 = vmatprep.subr.mxu0 0.0
    %204 = vmatpush1.msra.mxu0 0.0
    %205 = vmatprep.subr.mxu0 0.0
    %206 = vmatpush1.msra.mxu0 0.0
    %207 = vmatprep.subr.mxu0 0.0
    %208 = vmatpush1.msra.mxu0 0.0
    %209 = vmatprep.subr.mxu0 0.0
    %210 = vmatpush1.msra.mxu0 0.0
    %211 = vmatprep.subr.mxu0 0.0
    %212 = vmatpush1.msra.mxu0 0.0
    %213 = vmatprep.subr.mxu0 0.0
    %214 = vmatpush1.msra.mxu0 0.0
    %215 = vmatprep.subr.mxu0 0.0
    %216 = vmatpush1.msra.mxu0 0.0
    %217 = vmatprep.subr.mxu0 0.0
    %218 = vmatpush1.msra.mxu0 0.0
    %219 = vmatprep.subr.mxu0 0.0
    %220 = vmatpush1.msra.mxu0 0.0
    %221 = vmatprep.subr.mxu0 0.0
    %222 = vmatpush1.msra.mxu0 0.0
    %223 = vmatprep.subr.mxu0 0.0
    %224 = vmatpush1.msra.mxu0 0.0
    %225 = vmatprep.subr.mxu0 0.0
    %226 = vmatpush1.msra.mxu0 0.0
    %227 = vmatprep.subr.mxu0 0.0
    %228 = vmatpush1.msra.mxu0 0.0
    %229 = vmatprep.mubr.f32.mxu0 0.0
    %230 = vmatmul.mubr.f32.gmra.mrb[0].mxu0 %v157
    %v231 = vpop.f32.mrb[0].mxu0
    %v232 = vadd.f32 %v142, %v231
    %v233 = vpop.f32.mrb[0].mxu0
    %234 = vmatprep.mubr.f32.mxu0 0.0
    %235 = vmatmul.mubr.f32.gmra.mrb[0].mxu0 %v159
    %v236 = vpop.f32.mrb[0].mxu0
    %v237 = vadd.f32 %v146, %v236
    %v238 = vpop.f32.mrb[0].mxu0
    %239 = vmatprep.mubr.f32.mxu0 0.0
    %240 = vmatmul.mubr.f32.gmra.mrb[0].mxu0 %v161
    %v241 = vpop.f32.mrb[0].mxu0
    %v242 = vadd.f32 %v150, %v241
    %v243 = vpop.f32.mrb[0].mxu0
    %244 = vmatprep.mubr.f32.mxu0 0.0
    %245 = vmatmul.mubr.f32.gmra.mrb[0].mxu0 %v163
    %v246 = vpop.f32.mrb[0].mxu0
    %v247 = vadd.f32 %v154, %v246
    %v248 = vpop.f32.mrb[0].mxu0
    %249 = vdwg.mxu0
    %v250 = vtanh.pop %v232
    %v251 = vtanh.pop %v237
    %v252 = vtanh.pop %v242
    %v253 = vtanh.pop %v247
    %254 = vset.pattern.permute.xlu0 37
    %255 = vperm.xlu0 %254, %v27
    %v256 = vpop.permute.xlu0 %255
    %258 = vset.pattern.permute.xlu0 37
    %259 = vperm.xlu0 %258, %v28
    %v260 = vpop.permute.xlu0 %259
    %262 = vset.pattern.permute.xlu0 37
    %263 = vperm.xlu0 %262, %v29
    %v264 = vpop.permute.xlu0 %263
    %266 = vset.pattern.permute.xlu0 37
    %267 = vperm.xlu0 %266, %v30
    %v268 = vpop.permute.xlu0 %267
    %v270 = vmul.f32 %v256, %v250
    %v271 = vmul.f32 %v260, %v251
    %v272 = vmul.f32 %v264, %v252
    %v273 = vmul.f32 %v268, %v253
    %v274 = vadd.f32 %v270, %v271
    %v275 = vadd.f32 %v274, %v272
    %v276 = vadd.f32 %v275, %v273
    %v277 = vrot.slane %v276, 4
    %v278 = vadd.f32 %v276, %v277
    %v279 = vrot.slane %v278, 2
    %v280 = vadd.f32 %v278, %v279
    %v281 = vrot.slane %v280, 1
    %v282 = vadd.f32 %v280, %v281
    %284 = vset.pattern.permute.xlu0 38
    %285 = vperm.xlu0 %284, %v31
    %v286 = vpop.permute.xlu0 %285
    %v288 = vadd.f32 %v282, %v286
    %289 = vst [vmem:[#allocation5] sm:$0x1] %v288
    // Predicated region
    $region14: #{actor_forward_t.1} parent=1 // pred_check
      _
    $region15: #{actor_forward_t.1} parent=1 // pred_check_branch
      %291 = sbr.rel (0) target = $region17
    $region16: #{actor_forward_t.1} parent=1 // pred_region
      %s293 = ssub.s32 16, 16
      %294 = vsyncadd [#allocation4], %s293
      %s296 = sshll.u32 [#allocation5], 4
      %s297 = int_to_ptr.vmem [resolvable:$true] %s296
      %299 = dma.vmem_to_hbm [thread:$0]  %s297, 16, %s2, [#allocation4]
    $region17: #{actor_forward_t.1} parent=1 // pred_fallthru
      _
    // Predicated region
    $region18: #{actor_forward_t.1} parent=1 // pred_check
      _
    $region19: #{actor_forward_t.1} parent=1 // pred_check_branch
      %301 = sbr.rel (0) target = $region21
    $region20: #{actor_forward_t.1} parent=1 // pred_region
      %302 = dma.done [#allocation4], 16
    $region21: #{actor_forward_t.1} parent=1 // pred_fallthru
      _
    %303 = vsyncpa [#allocation3], 1
    %304 = vsyncpa [#allocation4], 1

</llo_original>
